<compile_context>
chip_gen: v6e
topology: v6e:2x2x1
jax: 0.10.0
libtpu: 0.0.40
codegen_flags: <defaults>
</compile_context>

<pallas_src>
import numpy as np
import jax
import jax.numpy as jnp
from jax.experimental import pallas as pl
from jax.experimental.pallas import tpu as pltpu  # noqa: F401  (TPU backend assumed)


def _get_sinusoid_encoding_table(n_position: int, d_hid: int) -> np.ndarray:
    """Exact reproduction of the PyTorch buffer construction (float32)."""
    pos = np.arange(n_position, dtype=np.float64)[:, None]          # (P, 1)
    hid = np.arange(d_hid, dtype=np.float64)[None, :]                # (1, D)
    angles = pos / np.power(10000.0, 2.0 * (hid // 2) / d_hid)       # (P, D)
    table = angles.copy()
    table[1:, 0::2] = np.sin(angles[1:, 0::2])
    table[1:, 1::2] = np.cos(angles[1:, 1::2])
    return table.astype(np.float32)                                  # (P, D)


def _posenc_kernel(x_ref, pos_ref, o_ref):
    # x_ref  : (B, L*D)  x values repeated D times along the lane axis
    # pos_ref: (1, L*D)  row-major flattened first-L rows of the sinusoid table
    # o_ref  : (B, L*D)  lane-dense output slab (full-width vst, no masking)
    o_ref[...] = x_ref[...] * pos_ref[...]


def positional_encoding(x: jax.Array, pos_table: jax.Array) -> jax.Array:
    """x: (B, 1, L) float32; pos_table: (n_position, d_hid) float32.

    Returns (B, L, d_hid) == x.squeeze(1).unsqueeze(2) * pos_table[:L].
    """
    B, one, L = x.shape
    assert one == 1, "expects a size-1 dim at axis 1, matching x.squeeze(1)"
    P, D = pos_table.shape
    assert L <= P, f"sequence length {L} exceeds n_position {P}"
    LD = L * D

    # Layout plumbing (tiny / metadata-only), not compute hoisting:
    #   out_flat[b, l*D + d] = x[b, l] * pos_table[l, d]
    x_rep = jnp.repeat(x.reshape(B, L), D, axis=1)        # (B, L*D), lane-dense

    if LD % 128 == 0:
        # Pass the full table as a flat (1, P*D) view; the BlockSpec windows the
        # first L*D elements (row-major => exactly rows 0..L-1). No wrapper slice.
        pos_in = pos_table.reshape(1, P * D)
    else:
        # Fallback for non-128-multiple windows: block must equal full dims.
        pos_in = pos_table[:L].reshape(1, LD)

    out_flat = pl.pallas_call(
        _posenc_kernel,
        out_shape=jax.ShapeDtypeStruct((B, LD), x.dtype),
        grid=(1,),
        in_specs=[
            pl.BlockSpec((B, LD), lambda i: (0, 0)),   # x_rep, full block
            pl.BlockSpec((1, LD), lambda i: (0, 0)),   # window of the flat table
        ],
        out_specs=pl.BlockSpec((B, LD), lambda i: (0, 0)),
    )(x_rep, pos_in)

    # Free contiguous reshape back to the module's output shape.
    return out_flat.reshape(B, L, D)


if __name__ == "__main__":
    # Module hyper-params (synthetic, deterministic init — no checkpoint load).
    d_hid = 32
    n_position = 200

    # Example input consistent with forward: x of shape (B, 1, L), L <= n_position.
    B, L = 2, 16
    key = jax.random.PRNGKey(0)
    x = jax.random.normal(key, (B, 1, L), dtype=jnp.float32)

    pos_table_np = _get_sinusoid_encoding_table(n_position, d_hid)   # (200, 32)
    pos_table = jnp.asarray(pos_table_np)

    out = positional_encoding(x, pos_table)
    out = jax.block_until_ready(out)

    # Reference (plain JAX) check of the exact PyTorch broadcast semantics.
    ref = x.reshape(B, L)[:, :, None] * pos_table[:L][None, :, :]
    assert out.shape == (B, L, d_hid)
    np.testing.assert_allclose(np.asarray(out), np.asarray(ref), rtol=1e-6, atol=1e-6)

    print("KERNEL_OK")
</pallas_src>

<mosaic_0001>
module attributes {stable_mosaic.version = 11 : i64} {
  func.func @_posenc_kernel(%arg0: i32, %arg1: memref<2x512xf32, #tpu.memory_space<vmem>>, %arg2: memref<1x512xf32, #tpu.memory_space<vmem>>, %arg3: memref<2x512xf32, #tpu.memory_space<vmem>>) attributes {dimension_semantics = [#tpu.dimension_semantics<arbitrary>], iteration_bounds = array<i64: 1>, scalar_prefetch = 0 : i64, scratch_operands = 0 : i64, tpu.core_type = #tpu.core_type<tc>, window_params = [{pipeline_mode = #tpu.pipeline_mode<synchronous>, transform_indices = @transform_0, window_bounds = array<i64: 2, 512>}, {transform_indices = @transform_1, window_bounds = array<i64: 1, 512>}, {pipeline_mode = #tpu.pipeline_mode<synchronous>, transform_indices = @transform_2, window_bounds = array<i64: 2, 512>}]} {
    %c0 = arith.constant 0 : index
    %c0_0 = arith.constant 0 : index
    %0 = vector.load %arg1[%c0, %c0_0] : memref<2x512xf32, #tpu.memory_space<vmem>>, vector<2x512xf32>
    %c0_1 = arith.constant 0 : index
    %c0_2 = arith.constant 0 : index
    %1 = vector.load %arg2[%c0_1, %c0_2] : memref<1x512xf32, #tpu.memory_space<vmem>>, vector<1x512xf32>
    %2 = vector.broadcast %1 : vector<1x512xf32> to vector<2x512xf32>
    %3 = arith.mulf %0, %2 : vector<2x512xf32>
    %c0_3 = arith.constant 0 : index
    %c0_4 = arith.constant 0 : index
    %4 = vector.load %arg3[%c0_3, %c0_4] : memref<2x512xf32, #tpu.memory_space<vmem>>, vector<2x512xf32>
    tpu.vector_store %arg3[%c0_3, %c0_4], %3 {strides = array<i32>} : memref<2x512xf32, #tpu.memory_space<vmem>>, vector<2x512xf32>,
    return
  }
  func.func @transform_0(%arg0: i32) -> (i32, i32) {
    %c0_i32 = arith.constant 0 : i32
    %c0_i32_0 = arith.constant 0 : i32
    %c0_i32_1 = arith.constant 0 : i32
    return %c0_i32, %c0_i32_0 : i32, i32
  }
  func.func @transform_1(%arg0: i32) -> (i32, i32) {
    %c0_i32 = arith.constant 0 : i32
    %c0_i32_0 = arith.constant 0 : i32
    %c0_i32_1 = arith.constant 0 : i32
    return %c0_i32, %c0_i32_0 : i32, i32
  }
  func.func @transform_2(%arg0: i32) -> (i32, i32) {
    %c0_i32 = arith.constant 0 : i32
    %c0_i32_0 = arith.constant 0 : i32
    %c0_i32_1 = arith.constant 0 : i32
    return %c0_i32, %c0_i32_0 : i32, i32
  }
}

</mosaic_0001>

<llo_original>
// kernel: tpu_custom_call.1
$region0: #{tpu_custom_call.1}
  #allocation0 [shape = 'u32[]', space=smem, size = 0x4, offset = 0x4, fixed_abs, tag = 'smem constant byte address 0x4 - core index']
  #allocation1 [shape = 'u32[144,128]{1,0:T(1,128)}', space=vmem, size = 0x12000, scoped, tag = 'internal scratch']
  %s0 = inlined_call_operand.hbm [shape: f32[2,512], index: 0, kind: input, shape index: {}]
  %s1 = inlined_call_operand.hbm [shape: f32[1,6400], index: 1, kind: input, shape index: {}]
  %s2 = inlined_call_operand.hbm [shape: f32[2,512], index: 2, kind: output, shape index: {}]
  %s3 = sld [smem:[#allocation0]]
  $region26: #{tpu_custom_call.1} parent=0
    _
  %s5 = ssub.s32 1, %s3
  %s6 = scalar_select 0, %s5, %s3
  $region1: #{tpu_custom_call.1} parent=0
    #allocation2 [shape = 'u8[4096]{0}', space=vmem, size = 0x1000, scoped, tag = 'input window, operand 0, single buffered']
    #allocation3 [shape = 's32[1]{0}', space=sflag, size = 0x4, scoped, tag = 'scoped memory for tpu_custom_call.1']
    #allocation4 [shape = 's32[1]{0}', space=sflag, size = 0x4, scoped, tag = 'scoped memory for tpu_custom_call.1']
    #allocation5 [shape = 'u8[2048]{0}', space=vmem, size = 0x800, scoped, tag = 'input window, operand 1, single buffered']
    #allocation6 [shape = 's32[1]{0}', space=sflag, size = 0x4, scoped, tag = 'scoped memory for tpu_custom_call.1']
    #allocation7 [shape = 'u8[4096]{0}', space=vmem, size = 0x1000, scoped, tag = 'output window, operand 0, single buffered']
    %7 = vsyncpa [#allocation3], 0
    %8 = vsyncpa [#allocation6], 0
    %9 = vsyncpa [#allocation4], 0
    // Predicated region
    $region2: #{tpu_custom_call.1} parent=1 // pred_check
      _
    $region3: #{tpu_custom_call.1} parent=1 // pred_check_branch
      %11 = sbr.rel (0) target = $region5
    $region4: #{tpu_custom_call.1} parent=1 // pred_region
      %s13 = ssub.s32 128, 128
      %14 = vsyncadd [#allocation3], %s13
      %s16 = sshll.u32 [#allocation2], 4
      %s17 = int_to_ptr.vmem [resolvable:$true] %s16
      %19 = dma.hbm_to_vmem [thread:$0]  %s0, 128, %s17, [#allocation3]
    $region5: #{tpu_custom_call.1} parent=1 // pred_fallthru
      _
    // Predicated region
    $region6: #{tpu_custom_call.1} parent=1 // pred_check
      _
    $region7: #{tpu_custom_call.1} parent=1 // pred_check_branch
      %21 = sbr.rel (0) target = $region9
    $region8: #{tpu_custom_call.1} parent=1 // pred_region
      %s23 = ssub.s32 64, 64
      %24 = vsyncadd [#allocation6], %s23
      %s26 = sshll.u32 [#allocation5], 4
      %s27 = int_to_ptr.vmem [resolvable:$true] %s26
      %29 = dma.hbm_to_vmem [thread:$0]  %s1, 64, %s27, [#allocation6]
    $region9: #{tpu_custom_call.1} parent=1 // pred_fallthru
      _
    // Predicated region
    $region10: #{tpu_custom_call.1} parent=1 // pred_check
      _
    $region11: #{tpu_custom_call.1} parent=1 // pred_check_branch
      %31 = sbr.rel (0) target = $region13
    $region12: #{tpu_custom_call.1} parent=1 // pred_region
      %32 = dma.done [#allocation3], 128
    $region13: #{tpu_custom_call.1} parent=1 // pred_fallthru
      _
    // Predicated region
    $region14: #{tpu_custom_call.1} parent=1 // pred_check
      _
    $region15: #{tpu_custom_call.1} parent=1 // pred_check_branch
      %34 = sbr.rel (0) target = $region17
    $region16: #{tpu_custom_call.1} parent=1 // pred_region
      %35 = dma.done [#allocation6], 64
    $region17: #{tpu_custom_call.1} parent=1 // pred_fallthru
      _
    %v36 = vld [vmem:[#allocation2] sm:$0xff]
    %v37 = vld [vmem:[#allocation5] sm:$0xf]
    %v39 = vlaneseq
    %v40 = vshrl.u32 %v39, 7
    %v41 = vsub.s32 0, %v40
    %v42 = vrot.slane %v37, %v41
    %v43 = vlaneseq
    %v44 = vshrl.u32 %v43, 7
    %v45 = vsub.s32 1, %v44
    %v46 = vrot.slane %v37, %v45
    %v47 = vlaneseq
    %v48 = vshrl.u32 %v47, 7
    %v49 = vsub.s32 2, %v48
    %v50 = vrot.slane %v37, %v49
    %v51 = vlaneseq
    %v52 = vshrl.u32 %v51, 7
    %v53 = vsub.s32 3, %v52
    %v54 = vrot.slane %v37, %v53
    %v55 = vcombine.low %v42, %v46
    %v56 = vcombine.low %v50, %v54
    %v58 = vunpack.c.l.s4 1983009808
    %v59 = vunpack.c.0.s8 %v58
    %v60 = vlaneseq
    %v61 = vshrl.u32 %v60, 7
    %v62 = vsub.s32 %v59, %v61
    %v63 = vrot.slane %v55, %v62
    %v65 = vunpack.c.l.s4 1983009808
    %v66 = vunpack.c.0.s8 %v65
    %v67 = vlaneseq
    %v68 = vshrl.u32 %v67, 7
    %v69 = vsub.s32 %v66, %v68
    %v70 = vrot.slane %v56, %v69
    %v71 = vcombine.low %v63, %v70
    %v73 = vmul.f32 %v36, %v71
    %74 = vst [vmem:[#allocation7] sm:$0xff] %v73
    // Predicated region
    $region18: #{tpu_custom_call.1} parent=1 // pred_check
      _
    $region19: #{tpu_custom_call.1} parent=1 // pred_check_branch
      %76 = sbr.rel (0) target = $region21
    $region20: #{tpu_custom_call.1} parent=1 // pred_region
      %s78 = ssub.s32 128, 128
      %79 = vsyncadd [#allocation4], %s78
      %s81 = sshll.u32 [#allocation7], 4
      %s82 = int_to_ptr.vmem [resolvable:$true] %s81
      %84 = dma.vmem_to_hbm [thread:$0]  %s82, 128, %s2, [#allocation4]
    $region21: #{tpu_custom_call.1} parent=1 // pred_fallthru
      _
    // Predicated region
    $region22: #{tpu_custom_call.1} parent=1 // pred_check
      _
    $region23: #{tpu_custom_call.1} parent=1 // pred_check_branch
      %86 = sbr.rel (0) target = $region25
    $region24: #{tpu_custom_call.1} parent=1 // pred_region
      %87 = dma.done [#allocation4], 128
    $region25: #{tpu_custom_call.1} parent=1 // pred_fallthru
      _
    %88 = vsyncpa [#allocation3], 1
    %89 = vsyncpa [#allocation6], 1
    %90 = vsyncpa [#allocation4], 1

</llo_original>
